<compile_context>
chip_gen: v5e
topology: v5e:2x2
jax: 0.10.0
libtpu: 0.0.40
codegen_flags: <defaults>
</compile_context>

<pallas_src>
import functools

import jax
import jax.numpy as jnp
from jax.experimental import pallas as pl
from jax.experimental.pallas import tpu as pltpu


def _choose_tile_h(H, WC, itemsize, B, max_block_bytes=2 << 20):
    """Largest H-tile that divides H, is a multiple of 8 (or == H) and fits ~2 MiB.

    Pipelining / megacore steps come from the B axis; we only split H further when
    B == 1 would otherwise leave a single grid step (v7x: keep both TensorCores busy).
    """
    cands = sorted({th for th in range(8, H + 1, 8) if H % th == 0} | {H})
    fitting = [th for th in cands if th * WC * itemsize <= max_block_bytes]
    if not fitting:
        fitting = [min(cands)]
    th = max(fitting)
    if B * (H // th) < 2:
        smaller = [t for t in fitting if H // t >= 2]
        if smaller:
            th = max(smaller)
    return th


def _dwconv_kernel(x_ref, halo_ref, w_ref, b_ref, o_ref, *, C):
    # x_ref:    (1, TH, W*C)   rows of this H-tile (lane dim = W*C)
    # halo_ref: (1, 1, 2, W*C) [0]=row above the tile, [1]=row below (zeros at border)
    # w_ref:    (9, W*C)       taps row-major (kh*3+kw), broadcast over W; wrap lanes zeroed
    # b_ref:    (1, W*C)       bias broadcast over W
    # o_ref:    (1, TH, W*C)
    TH = x_ref.shape[1]
    WC = x_ref.shape[2]
    f32 = jnp.float32

    x = x_ref[0]            # native dtype (bf16 stays bf16 through the rolls)
    halo = halo_ref[0, 0]   # (2, WC)
    w = w_ref[...]          # (9, WC) f32
    b = b_ref[...]          # (1, WC) f32

    # Horizontal neighbours: two lane rolls, hoisted out of any per-tap loop.
    # Wrap-around lanes (w==0 left tap / w==W-1 right tap) are killed by the
    # pre-zeroed weight lanes, which implements horizontal zero padding for free.
    xl = pltpu.roll(x, shift=C, axis=1)        # xl[h, w*C+c] = x[h, (w-1)*C+c]
    xr = pltpu.roll(x, shift=WC - C, axis=1)   # xr[h, w*C+c] = x[h, (w+1)*C+c]
    hl = pltpu.roll(halo, shift=C, axis=1)
    hr = pltpu.roll(halo, shift=WC - C, axis=1)

    # Cast each rolled slab to f32 exactly once.
    xf, xlf, xrf = x.astype(f32), xl.astype(f32), xr.astype(f32)
    hf, hlf, hrf = halo.astype(f32), hl.astype(f32), hr.astype(f32)

    # Per-filter-row horizontal convolutions, evaluated on the (vertically unshifted) rows.
    h0 = xlf * w[0:1] + xf * w[1:2] + xrf * w[2:3]            # filter row kh = 0
    acc = xlf * w[3:4] + xf * w[4:5] + xrf * w[5:6] + b       # center row kh = 1 (+ bias)
    h2 = xlf * w[6:7] + xf * w[7:8] + xrf * w[8:9]            # filter row kh = 2

    # Halo-row contributions (these feed output row 0 / row TH-1 of the tile).
    top_c = hlf[0:1] * w[0:1] + hf[0:1] * w[1:2] + hrf[0:1] * w[2:3]
    bot_c = hlf[1:2] * w[6:7] + hf[1:2] * w[7:8] + hrf[1:2] * w[8:9]

    # Vertical taps: out[h] += h0[h-1] + h2[h+1].  Sublane rolls; the wrapped border
    # row is replaced by the halo contribution via a 1-row select (no concatenate,
    # no sublane-unaligned full-tile slices).
    if TH > 1:
        rows = jax.lax.broadcasted_iota(jnp.int32, (TH, 1), 0)
        up = pltpu.roll(h0, shift=1, axis=0)          # up[h] = h0[h-1]; up[0] wraps
        up = jnp.where(rows == 0, top_c, up)
        dn = pltpu.roll(h2, shift=TH - 1, axis=0)     # dn[h] = h2[h+1]; dn[TH-1] wraps
        dn = jnp.where(rows == TH - 1, bot_c, dn)
    else:
        up = top_c
        dn = bot_c

    o_ref[0] = (acc + up + dn).astype(o_ref.dtype)


def dwconv(x, weight, bias, H, W, *, block_h=None):
    """Pallas depthwise-conv forward matching DWConv.forward(x, H, W).

    x:      (B, N, C) with N == H*W
    weight: (C, 1, 3, 3)   (PyTorch depthwise Conv2d weight layout)
    bias:   (C,)
    returns (B, N, C)
    """
    B, N, C = x.shape
    assert N == H * W, "sequence length must equal H*W"
    WC = W * C
    itemsize = jnp.dtype(x.dtype).itemsize

    # (B, H*W, C) -> (B, H, W*C): contiguous reshape, no data movement; lane dim = W*C.
    x_r = x.reshape(B, H, WC)

    TH = block_h if block_h is not None else _choose_tile_h(H, WC, itemsize, B)
    assert H % TH == 0 and (TH % 8 == 0 or TH == H), "invalid H tile"
    nH = H // TH

    # One halo row above + one below each H-tile (zeros at the image border), merged
    # into a single side input so each grid step issues one small DMA.
    zero_row = jnp.zeros((B, 1, WC), x.dtype)
    if nH > 1:
        prev_rows = x_r[:, TH - 1:H - 1:TH, :]          # global rows TH-1, 2TH-1, ...
        next_rows = x_r[:, TH:H:TH, :]                  # global rows TH, 2TH, ...
        top = jnp.concatenate([zero_row, prev_rows], axis=1)   # (B, nH, WC)
        bot = jnp.concatenate([next_rows, zero_row], axis=1)   # (B, nH, WC)
    else:
        top = zero_row
        bot = zero_row
    halo = jnp.stack([top, bot], axis=2)                # (B, nH, 2, WC)

    # Depthwise taps broadcast across W, flattened to (9, WC) (less sublane padding
    # than (3,3,WC)).  Zero the lanes that would pick up the wrapped columns of the
    # in-kernel lane rolls (left tap @ w=0, right tap @ w=W-1) -> horizontal padding.
    w_hwc = jnp.transpose(weight[:, 0, :, :], (1, 2, 0)).astype(jnp.float32)   # (3,3,C)
    w_flat = jnp.tile(w_hwc, (1, 1, W)).reshape(9, WC)                          # (9, W*C)
    w_flat = w_flat.at[0::3, :C].set(0.0)          # kw == 0 taps: kill column w == 0
    w_flat = w_flat.at[2::3, WC - C:].set(0.0)     # kw == 2 taps: kill column w == W-1
    b_flat = jnp.tile(bias.astype(jnp.float32), W).reshape(1, WC)

    kernel = functools.partial(_dwconv_kernel, C=C)

    # VMEM budget: double-buffered in/out blocks + ~8 block-sized f32 temporaries + slack.
    block_bytes = TH * WC * itemsize
    f32_block = TH * WC * 4
    vmem_limit = int(min(48 << 20, max(32 << 20, 4 * block_bytes + 8 * f32_block + (2 << 20))))

    cost = pl.CostEstimate(
        flops=18 * B * H * W * C,
        transcendentals=0,
        bytes_accessed=int((2 * B * H * WC + B * nH * 2 * WC) * itemsize + 10 * WC * 4),
    )

    out = pl.pallas_call(
        kernel,
        out_shape=jax.ShapeDtypeStruct((B, H, WC), x.dtype),
        grid_spec=pltpu.PrefetchScalarGridSpec(
            num_scalar_prefetch=0,
            grid=(B, nH),
            in_specs=[
                pl.BlockSpec((1, TH, WC), lambda b, h: (b, h, 0)),
                pl.BlockSpec((1, 1, 2, WC), lambda b, h: (b, h, 0, 0)),
                pl.BlockSpec((9, WC), lambda b, h: (0, 0)),
                pl.BlockSpec((1, WC), lambda b, h: (0, 0)),
            ],
            out_specs=pl.BlockSpec((1, TH, WC), lambda b, h: (b, h, 0)),
        ),
        compiler_params=pltpu.CompilerParams(
            dimension_semantics=("parallel", "parallel"),
            vmem_limit_bytes=vmem_limit,
        ),
        cost_estimate=cost,
    )(x_r, halo, w_flat, b_flat)

    return out.reshape(B, N, C)


def dwconv_reference(x, weight, bias, H, W):
    """Pure-JAX reference (lax depthwise conv) for correctness check."""
    B, N, C = x.shape
    xr = x.reshape(B, H, W, C)
    w_hwio = jnp.transpose(weight, (2, 3, 1, 0))            # (3, 3, 1, C)
    out = jax.lax.conv_general_dilated(
        xr, w_hwio,
        window_strides=(1, 1),
        padding=((1, 1), (1, 1)),
        dimension_numbers=("NHWC", "HWIO", "NHWC"),
        feature_group_count=C)
    out = out + bias
    return out.reshape(B, N, C)


def _run_case(key, B, C, H, W, block_h=None, dtype=jnp.float32):
    N = H * W
    kx, kw, kb = jax.random.split(key, 3)
    x = jax.random.normal(kx, (B, N, C), dtype=jnp.float32)
    fan_in = 1 * 3 * 3   # in_channels/groups * kh * kw
    bound = 1.0 / (fan_in ** 0.5)
    weight = jax.random.uniform(kw, (C, 1, 3, 3), jnp.float32, -bound, bound)
    bias = jax.random.uniform(kb, (C,), jnp.float32, -bound, bound)

    x_in = x.astype(dtype)
    out = dwconv(x_in, weight, bias, H, W, block_h=block_h)
    out = jax.block_until_ready(out)
    ref = dwconv_reference(x_in.astype(jnp.float32), weight, bias, H, W)
    assert out.shape == (B, N, C)
    tol = 1e-5 if dtype == jnp.float32 else 3e-2
    assert jnp.allclose(out.astype(jnp.float32), ref, atol=tol, rtol=tol), (
        f"mismatch vs reference at B={B},C={C},H={H},W={W},block_h={block_h},dtype={dtype}")


if __name__ == "__main__":
    key = jax.random.PRNGKey(0)
    k1, k2, k3, k4 = jax.random.split(key, 4)
    # W*C = 128 keeps lanes fully dense at these small shapes.
    _run_case(k1, B=2, C=8, H=16, W=16)                 # default tiling: one tile / image
    _run_case(k2, B=2, C=8, H=16, W=16, block_h=8)      # forced 2 H-tiles: halo path
    _run_case(k3, B=1, C=16, H=8, W=8)                  # tiny single-tile image
    _run_case(k4, B=2, C=8, H=16, W=16, dtype=jnp.bfloat16)   # bf16-through-rolls path
    print("KERNEL_OK")
</pallas_src>

<mosaic_0001>
module attributes {stable_mosaic.version = 11 : i64} {
  func.func @_dwconv_kernel(%arg0: i32, %arg1: i32, %arg2: memref<1x16x128xf32, #tpu.memory_space<vmem>>, %arg3: memref<1x1x2x128xf32, #tpu.memory_space<vmem>>, %arg4: memref<9x128xf32, #tpu.memory_space<vmem>>, %arg5: memref<1x128xf32, #tpu.memory_space<vmem>>, %arg6: memref<1x16x128xf32, #tpu.memory_space<vmem>>) attributes {dimension_semantics = [#tpu.dimension_semantics<parallel>, #tpu.dimension_semantics<parallel>], iteration_bounds = array<i64: 2, 1>, scalar_prefetch = 0 : i64, scratch_operands = 0 : i64, tpu.core_type = #tpu.core_type<tc>, window_params = [{transform_indices = @transform_0, window_bounds = array<i64: 1, 16, 128>}, {transform_indices = @transform_1, window_bounds = array<i64: 1, 1, 2, 128>}, {pipeline_mode = #tpu.pipeline_mode<synchronous>, transform_indices = @transform_2, window_bounds = array<i64: 9, 128>}, {pipeline_mode = #tpu.pipeline_mode<synchronous>, transform_indices = @transform_3, window_bounds = array<i64: 1, 128>}, {transform_indices = @transform_4, window_bounds = array<i64: 1, 16, 128>}]} {
    %c0 = arith.constant 0 : index
    %c0_0 = arith.constant 0 : index
    %c0_1 = arith.constant 0 : index
    %0 = vector.load %arg2[%c0, %c0_0, %c0_1] : memref<1x16x128xf32, #tpu.memory_space<vmem>>, vector<1x16x128xf32>
    %1 = vector.shape_cast %0 : vector<1x16x128xf32> to vector<16x128xf32>
    %c0_2 = arith.constant 0 : index
    %c0_3 = arith.constant 0 : index
    %c0_4 = arith.constant 0 : index
    %c0_5 = arith.constant 0 : index
    %2 = vector.load %arg3[%c0_2, %c0_3, %c0_4, %c0_5] : memref<1x1x2x128xf32, #tpu.memory_space<vmem>>, vector<1x1x2x128xf32>
    %3 = vector.shape_cast %2 : vector<1x1x2x128xf32> to vector<2x128xf32>
    %c0_6 = arith.constant 0 : index
    %c0_7 = arith.constant 0 : index
    %4 = vector.load %arg4[%c0_6, %c0_7] : memref<9x128xf32, #tpu.memory_space<vmem>>, vector<9x128xf32>
    %c0_8 = arith.constant 0 : index
    %c0_9 = arith.constant 0 : index
    %5 = vector.load %arg5[%c0_8, %c0_9] : memref<1x128xf32, #tpu.memory_space<vmem>>, vector<1x128xf32>
    %c8_i32 = arith.constant 8 : i32
    %6 = tpu.dynamic_rotate %1 by %c8_i32 dim 1 : vector<16x128xf32>, i32 -> vector<16x128xf32>
    %c120_i32 = arith.constant 120 : i32
    %7 = tpu.dynamic_rotate %1 by %c120_i32 dim 1 : vector<16x128xf32>, i32 -> vector<16x128xf32>
    %c8_i32_10 = arith.constant 8 : i32
    %8 = tpu.dynamic_rotate %3 by %c8_i32_10 dim 1 : vector<2x128xf32>, i32 -> vector<2x128xf32>
    %c120_i32_11 = arith.constant 120 : i32
    %9 = tpu.dynamic_rotate %3 by %c120_i32_11 dim 1 : vector<2x128xf32>, i32 -> vector<2x128xf32>
    %10 = vector.extract_strided_slice %4 {offsets = [0, 0], sizes = [1, 128], strides = [1, 1]} : vector<9x128xf32> to vector<1x128xf32>
    %11 = vector.broadcast %10 : vector<1x128xf32> to vector<16x128xf32>
    %12 = arith.mulf %6, %11 : vector<16x128xf32>
    %13 = vector.extract_strided_slice %4 {offsets = [1, 0], sizes = [1, 128], strides = [1, 1]} : vector<9x128xf32> to vector<1x128xf32>
    %14 = vector.broadcast %13 : vector<1x128xf32> to vector<16x128xf32>
    %15 = arith.mulf %1, %14 : vector<16x128xf32>
    %16 = arith.addf %12, %15 : vector<16x128xf32>
    %17 = vector.extract_strided_slice %4 {offsets = [2, 0], sizes = [1, 128], strides = [1, 1]} : vector<9x128xf32> to vector<1x128xf32>
    %18 = vector.broadcast %17 : vector<1x128xf32> to vector<16x128xf32>
    %19 = arith.mulf %7, %18 : vector<16x128xf32>
    %20 = arith.addf %16, %19 : vector<16x128xf32>
    %21 = vector.extract_strided_slice %4 {offsets = [3, 0], sizes = [1, 128], strides = [1, 1]} : vector<9x128xf32> to vector<1x128xf32>
    %22 = vector.broadcast %21 : vector<1x128xf32> to vector<16x128xf32>
    %23 = arith.mulf %6, %22 : vector<16x128xf32>
    %24 = vector.extract_strided_slice %4 {offsets = [4, 0], sizes = [1, 128], strides = [1, 1]} : vector<9x128xf32> to vector<1x128xf32>
    %25 = vector.broadcast %24 : vector<1x128xf32> to vector<16x128xf32>
    %26 = arith.mulf %1, %25 : vector<16x128xf32>
    %27 = arith.addf %23, %26 : vector<16x128xf32>
    %28 = vector.extract_strided_slice %4 {offsets = [5, 0], sizes = [1, 128], strides = [1, 1]} : vector<9x128xf32> to vector<1x128xf32>
    %29 = vector.broadcast %28 : vector<1x128xf32> to vector<16x128xf32>
    %30 = arith.mulf %7, %29 : vector<16x128xf32>
    %31 = arith.addf %27, %30 : vector<16x128xf32>
    %32 = vector.broadcast %5 : vector<1x128xf32> to vector<16x128xf32>
    %33 = arith.addf %31, %32 : vector<16x128xf32>
    %34 = vector.extract_strided_slice %4 {offsets = [6, 0], sizes = [1, 128], strides = [1, 1]} : vector<9x128xf32> to vector<1x128xf32>
    %35 = vector.broadcast %34 : vector<1x128xf32> to vector<16x128xf32>
    %36 = arith.mulf %6, %35 : vector<16x128xf32>
    %37 = vector.extract_strided_slice %4 {offsets = [7, 0], sizes = [1, 128], strides = [1, 1]} : vector<9x128xf32> to vector<1x128xf32>
    %38 = vector.broadcast %37 : vector<1x128xf32> to vector<16x128xf32>
    %39 = arith.mulf %1, %38 : vector<16x128xf32>
    %40 = arith.addf %36, %39 : vector<16x128xf32>
    %41 = vector.extract_strided_slice %4 {offsets = [8, 0], sizes = [1, 128], strides = [1, 1]} : vector<9x128xf32> to vector<1x128xf32>
    %42 = vector.broadcast %41 : vector<1x128xf32> to vector<16x128xf32>
    %43 = arith.mulf %7, %42 : vector<16x128xf32>
    %44 = arith.addf %40, %43 : vector<16x128xf32>
    %45 = vector.extract_strided_slice %8 {offsets = [0, 0], sizes = [1, 128], strides = [1, 1]} : vector<2x128xf32> to vector<1x128xf32>
    %46 = vector.extract_strided_slice %4 {offsets = [0, 0], sizes = [1, 128], strides = [1, 1]} : vector<9x128xf32> to vector<1x128xf32>
    %47 = arith.mulf %45, %46 : vector<1x128xf32>
    %48 = vector.extract_strided_slice %3 {offsets = [0, 0], sizes = [1, 128], strides = [1, 1]} : vector<2x128xf32> to vector<1x128xf32>
    %49 = vector.extract_strided_slice %4 {offsets = [1, 0], sizes = [1, 128], strides = [1, 1]} : vector<9x128xf32> to vector<1x128xf32>
    %50 = arith.mulf %48, %49 : vector<1x128xf32>
    %51 = arith.addf %47, %50 : vector<1x128xf32>
    %52 = vector.extract_strided_slice %9 {offsets = [0, 0], sizes = [1, 128], strides = [1, 1]} : vector<2x128xf32> to vector<1x128xf32>
    %53 = vector.extract_strided_slice %4 {offsets = [2, 0], sizes = [1, 128], strides = [1, 1]} : vector<9x128xf32> to vector<1x128xf32>
    %54 = arith.mulf %52, %53 : vector<1x128xf32>
    %55 = arith.addf %51, %54 : vector<1x128xf32>
    %56 = vector.extract_strided_slice %8 {offsets = [1, 0], sizes = [1, 128], strides = [1, 1]} : vector<2x128xf32> to vector<1x128xf32>
    %57 = vector.extract_strided_slice %4 {offsets = [6, 0], sizes = [1, 128], strides = [1, 1]} : vector<9x128xf32> to vector<1x128xf32>
    %58 = arith.mulf %56, %57 : vector<1x128xf32>
    %59 = vector.extract_strided_slice %3 {offsets = [1, 0], sizes = [1, 128], strides = [1, 1]} : vector<2x128xf32> to vector<1x128xf32>
    %60 = vector.extract_strided_slice %4 {offsets = [7, 0], sizes = [1, 128], strides = [1, 1]} : vector<9x128xf32> to vector<1x128xf32>
    %61 = arith.mulf %59, %60 : vector<1x128xf32>
    %62 = arith.addf %58, %61 : vector<1x128xf32>
    %63 = vector.extract_strided_slice %9 {offsets = [1, 0], sizes = [1, 128], strides = [1, 1]} : vector<2x128xf32> to vector<1x128xf32>
    %64 = vector.extract_strided_slice %4 {offsets = [8, 0], sizes = [1, 128], strides = [1, 1]} : vector<9x128xf32> to vector<1x128xf32>
    %65 = arith.mulf %63, %64 : vector<1x128xf32>
    %66 = arith.addf %62, %65 : vector<1x128xf32>
    %67 = tpu.iota {dimensions = array<i32: 0>} : vector<16x1xi32>
    %c1_i32 = arith.constant 1 : i32
    %68 = tpu.dynamic_rotate %20 by %c1_i32 dim 0 : vector<16x128xf32>, i32 -> vector<16x128xf32>
    %c0_i32 = arith.constant 0 : i32
    %69 = vector.broadcast %c0_i32 : i32 to vector<16x1xi32>
    %70 = arith.cmpi eq, %67, %69 : vector<16x1xi32>
    %71 = vector.shape_cast %70 : vector<16x1xi1> to vector<16x1xi1>
    %72 = vector.broadcast %71 : vector<16x1xi1> to vector<16x128xi1>
    %73 = vector.shape_cast %55 : vector<1x128xf32> to vector<1x128xf32>
    %74 = vector.broadcast %73 : vector<1x128xf32> to vector<16x128xf32>
    %75 = arith.select %72, %74, %68 : vector<16x128xi1>, vector<16x128xf32>
    %c15_i32 = arith.constant 15 : i32
    %76 = tpu.dynamic_rotate %44 by %c15_i32 dim 0 : vector<16x128xf32>, i32 -> vector<16x128xf32>
    %c15_i32_12 = arith.constant 15 : i32
    %77 = vector.broadcast %c15_i32_12 : i32 to vector<16x1xi32>
    %78 = arith.cmpi eq, %67, %77 : vector<16x1xi32>
    %79 = vector.shape_cast %78 : vector<16x1xi1> to vector<16x1xi1>
    %80 = vector.broadcast %79 : vector<16x1xi1> to vector<16x128xi1>
    %81 = vector.shape_cast %66 : vector<1x128xf32> to vector<1x128xf32>
    %82 = vector.broadcast %81 : vector<1x128xf32> to vector<16x128xf32>
    %83 = arith.select %80, %82, %76 : vector<16x128xi1>, vector<16x128xf32>
    %84 = arith.addf %33, %75 : vector<16x128xf32>
    %85 = arith.addf %84, %83 : vector<16x128xf32>
    %c0_13 = arith.constant 0 : index
    %c0_14 = arith.constant 0 : index
    %c0_15 = arith.constant 0 : index
    %86 = vector.load %arg6[%c0_13, %c0_14, %c0_15] : memref<1x16x128xf32, #tpu.memory_space<vmem>>, vector<1x16x128xf32>
    %87 = vector.shape_cast %86 : vector<1x16x128xf32> to vector<16x128xf32>
    %88 = vector.shape_cast %85 : vector<16x128xf32> to vector<1x16x128xf32>
    tpu.vector_store %arg6[%c0_13, %c0_14, %c0_15], %88 {strides = array<i32>} : memref<1x16x128xf32, #tpu.memory_space<vmem>>, vector<1x16x128xf32>,
    return
  }
  func.func @transform_0(%arg0: i32, %arg1: i32) -> (i32, i32, i32) {
    %c0_i32 = arith.constant 0 : i32
    %c0_i32_0 = arith.constant 0 : i32
    return %arg0, %arg1, %c0_i32 : i32, i32, i32
  }
  func.func @transform_1(%arg0: i32, %arg1: i32) -> (i32, i32, i32, i32) {
    %c0_i32 = arith.constant 0 : i32
    %c0_i32_0 = arith.constant 0 : i32
    %c0_i32_1 = arith.constant 0 : i32
    return %arg0, %arg1, %c0_i32, %c0_i32_0 : i32, i32, i32, i32
  }
  func.func @transform_2(%arg0: i32, %arg1: i32) -> (i32, i32) {
    %c0_i32 = arith.constant 0 : i32
    %c0_i32_0 = arith.constant 0 : i32
    %c0_i32_1 = arith.constant 0 : i32
    return %c0_i32, %c0_i32_0 : i32, i32
  }
  func.func @transform_3(%arg0: i32, %arg1: i32) -> (i32, i32) {
    %c0_i32 = arith.constant 0 : i32
    %c0_i32_0 = arith.constant 0 : i32
    %c0_i32_1 = arith.constant 0 : i32
    return %c0_i32, %c0_i32_0 : i32, i32
  }
  func.func @transform_4(%arg0: i32, %arg1: i32) -> (i32, i32, i32) {
    %c0_i32 = arith.constant 0 : i32
    %c0_i32_0 = arith.constant 0 : i32
    return %arg0, %arg1, %c0_i32 : i32, i32, i32
  }
}

</mosaic_0001>

<llo_original>
// kernel: tpu_custom_call.1
$region0: #{tpu_custom_call.1}
  #allocation0 [shape = 'u32[]', space=smem, size = 0x4, offset = 0x4, fixed_abs, tag = 'smem constant byte address 0x4 - core index']
  #allocation1 [shape = 'u32[72,128]{1,0:T(1,128)}', space=vmem, size = 0x9000, scoped, tag = 'internal scratch']
  %s0 = inlined_call_operand.hbm [shape: f32[2,16,128], index: 0, kind: input, shape index: {}]
  %s1 = inlined_call_operand.hbm [shape: f32[2,1,2,128], index: 1, kind: input, shape index: {}]
  %s2 = inlined_call_operand.hbm [shape: f32[9,128], index: 2, kind: input, shape index: {}]
  %s3 = inlined_call_operand.vmem [shape: f32[1,128], index: 3, kind: input, shape index: {}]
  %s4 = inlined_call_operand.hbm [shape: f32[2,16,128], index: 4, kind: output, shape index: {}]
  %s5 = sld [smem:[#allocation0]]
  $region61: #{tpu_custom_call.1} parent=0
    _
  %s7 = ssub.s32 1, %s5
  %s8 = scalar_select 0, %s7, %s5
  $region1: #{tpu_custom_call.1} parent=0
    #allocation2 [shape = 'u8[16384]{0}', space=vmem, size = 0x4000, scoped, tag = 'input window, operand 0']
    #allocation3 [shape = 's32[2]{0}', space=sflag, size = 0x8, scoped, tag = 'scoped memory for tpu_custom_call.1']
    #allocation4 [shape = 's32[2]{0}', space=sflag, size = 0x8, scoped, tag = 'scoped memory for tpu_custom_call.1']
    #allocation5 [shape = 'u8[2048]{0}', space=vmem, size = 0x800, scoped, tag = 'input window, operand 1']
    #allocation6 [shape = 's32[2]{0}', space=sflag, size = 0x8, scoped, tag = 'scoped memory for tpu_custom_call.1']
    #allocation7 [shape = 'u8[8192]{0}', space=vmem, size = 0x2000, scoped, tag = 'input window, operand 2, single buffered']
    #allocation8 [shape = 'u8[16384]{0}', space=vmem, size = 0x4000, scoped, tag = 'output window, operand 0']
    %9 = vsyncpa [#allocation3], 0
    %s10 = scalar_lea.sflag [#allocation3], 1
    %11 = vsyncpa %s10, 0
    %12 = vsyncpa [#allocation6], 0
    %s13 = scalar_lea.sflag [#allocation6], 1
    %14 = vsyncpa %s13, 0
    %15 = vsyncpa [#allocation4], 0
    %s16 = scalar_lea.sflag [#allocation4], 1
    %17 = vsyncpa %s16, 0
    loop: start=0, step=1, limit=4
    $region2: #{tpu_custom_call.1} parent=1 // loop_pre_header
      _
    $region3: #{tpu_custom_call.1} parent=1 // loop_header
      %s19 = sphi 0, %s23
      %p20 = scmp.ge.s32.totalorder %s19, 4
      %s26 = sphi 0, %s38
      %s27 = sphi 0, %s34
      %s28 = sphi 0, %s26
      %s29 = sphi 0, %s27
      %s30 = sphi 0, %s28
      %s31 = sphi 0, %s29
      %s43 = sphi 0, %s45
      %s46 = sphi 0, %s43
      %s47 = sphi 0, %s46
      %s63 = sphi 0, %s47
      %s71 = sphi 0, %s73
      %s74 = sphi 0, %s71
      %s75 = sphi 0, %s74
      %s91 = sphi 0, %s75
      %s95 = sphi 0, %s95
      %s97 = sphi 0, %s95
      %s98 = sphi 0, %s97
      %s112 = sphi 0, %s98
      %s116 = sphi 0, %s116
      %s118 = sphi 0, %s116
      %s119 = sphi 0, %s118
      %s133 = sphi 0, %s119
      %s141 = sphi 0, %s143
      %s144 = sphi 0, %s141
      %s145 = sphi 0, %s144
      %s161 = sphi 0, %s145
    $region4: #{tpu_custom_call.1} parent=1 // loop_header_branch
      %22 = sbr.rel (%p20) target = $region8
    $region5: #{tpu_custom_call.1} parent=1 // loop_body
      %s24 = ssub.s32 %s19, 1
      %s25 = ssub.s32 %s19, 2
      %s32 = sadd.s32 1, %s27
      %p33 = scmp.ge.s32.totalorder %s32, 1
      %s34 = scalar_select %p33, 0, %s32
      %s35 = sadd.s32 1, %s26
      %s36 = scalar_select %p33, %s35, %s26
      %p37 = scmp.ge.s32.totalorder %s36, 2
      %s38 = scalar_select %p37, 0, %s36
      %s39 = ssub.s32 %s26, %s38
      %s40 = ssub.s32 %s27, %s34
      %s41 = sor.u32 %s39, %s40
      %p42 = scmp.eq.s32.totalorder %s41, 0
      %s44 = sadd.s32 %s43, 1
      %s45 = scalar_select %p42, %s43, %s44
      %p48 = pneg %p42
      %p49 = scmp.eq.s32.totalorder %s19, 1
      %p50 = por %p48, %p49
      %p51 = scmp.ne.s32.totalorder %s43, %s46
      %p52 = scmp.eq.s32.totalorder %s19, 0
      %p53 = por %p51, %p52
      %p54 = scmp.ne.s32.totalorder %s43, %s46
      %p55 = scmp.eq.s32.totalorder %s24, 1
      %p56 = por %p54, %p55
      %p57 = scmp.ne.s32.totalorder %s46, %s47
      %p58 = scmp.eq.s32.totalorder %s24, 0
      %p59 = por %p57, %p58
      %p60 = scmp.ne.s32.totalorder %s46, %s47
      %p61 = scmp.eq.s32.totalorder %s25, 1
      %p62 = por %p60, %p61
      %p64 = scmp.ne.s32.totalorder %s47, %s63
      %p65 = scmp.eq.s32.totalorder %s25, 0
      %p66 = por %p64, %p65
      %s67 = ssub.s32 %s26, %s38
      %s68 = ssub.s32 %s27, %s34
      %s69 = sor.u32 %s67, %s68
      %p70 = scmp.eq.s32.totalorder %s69, 0
      %s72 = sadd.s32 %s71, 1
      %s73 = scalar_select %p70, %s71, %s72
      %p76 = pneg %p70
      %p77 = scmp.eq.s32.totalorder %s19, 1
      %p78 = por %p76, %p77
      %p79 = scmp.ne.s32.totalorder %s71, %s74
      %p80 = scmp.eq.s32.totalorder %s19, 0
      %p81 = por %p79, %p80
      %p82 = scmp.ne.s32.totalorder %s71, %s74
      %p83 = scmp.eq.s32.totalorder %s24, 1
      %p84 = por %p82, %p83
      %p85 = scmp.ne.s32.totalorder %s74, %s75
      %p86 = scmp.eq.s32.totalorder %s24, 0
      %p87 = por %p85, %p86
      %p88 = scmp.ne.s32.totalorder %s74, %s75
      %p89 = scmp.eq.s32.totalorder %s25, 1
      %p90 = por %p88, %p89
      %p92 = scmp.ne.s32.totalorder %s75, %s91
      %p93 = scmp.eq.s32.totalorder %s25, 0
      %p94 = por %p92, %p93
      %s96 = sadd.s32 %s95, 1
      %p99 = scmp.eq.s32.totalorder %s19, 1
      %p100 = scmp.ne.s32.totalorder %s95, %s97
      %p101 = scmp.eq.s32.totalorder %s19, 0
      %p102 = por %p100, %p101
      %p103 = scmp.ne.s32.totalorder %s95, %s97
      %p104 = scmp.eq.s32.totalorder %s24, 1
      %p105 = por %p103, %p104
      %p106 = scmp.ne.s32.totalorder %s97, %s98
      %p107 = scmp.eq.s32.totalorder %s24, 0
      %p108 = por %p106, %p107
      %p109 = scmp.ne.s32.totalorder %s97, %s98
      %p110 = scmp.eq.s32.totalorder %s25, 1
      %p111 = por %p109, %p110
      %p113 = scmp.ne.s32.totalorder %s98, %s112
      %p114 = scmp.eq.s32.totalorder %s25, 0
      %p115 = por %p113, %p114
      %s117 = sadd.s32 %s116, 1
      %p120 = scmp.eq.s32.totalorder %s19, 1
      %p121 = scmp.ne.s32.totalorder %s116, %s118
      %p122 = scmp.eq.s32.totalorder %s19, 0
      %p123 = por %p121, %p122
      %p124 = scmp.ne.s32.totalorder %s116, %s118
      %p125 = scmp.eq.s32.totalorder %s24, 1
      %p126 = por %p124, %p125
      %p127 = scmp.ne.s32.totalorder %s118, %s119
      %p128 = scmp.eq.s32.totalorder %s24, 0
      %p129 = por %p127, %p128
      %p130 = scmp.ne.s32.totalorder %s118, %s119
      %p131 = scmp.eq.s32.totalorder %s25, 1
      %p132 = por %p130, %p131
      %p134 = scmp.ne.s32.totalorder %s119, %s133
      %p135 = scmp.eq.s32.totalorder %s25, 0
      %p136 = por %p134, %p135
      %s137 = ssub.s32 %s26, %s38
      %s138 = ssub.s32 %s27, %s34
      %s139 = sor.u32 %s137, %s138
      %p140 = scmp.eq.s32.totalorder %s139, 0
      %s142 = sadd.s32 %s141, 1
      %s143 = scalar_select %p140, %s141, %s142
      %p146 = pneg %p140
      %p147 = scmp.eq.s32.totalorder %s19, 1
      %p148 = por %p146, %p147
      %p149 = scmp.ne.s32.totalorder %s141, %s144
      %p150 = scmp.eq.s32.totalorder %s19, 0
      %p151 = por %p149, %p150
      %p152 = scmp.ne.s32.totalorder %s141, %s144
      %p153 = scmp.eq.s32.totalorder %s24, 1
      %p154 = por %p152, %p153
      %p155 = scmp.ne.s32.totalorder %s144, %s145
      %p156 = scmp.eq.s32.totalorder %s24, 0
      %p157 = por %p155, %p156
      %p158 = scmp.ne.s32.totalorder %s144, %s145
      %p159 = scmp.eq.s32.totalorder %s25, 1
      %p160 = por %p158, %p159
      %p162 = scmp.ne.s32.totalorder %s145, %s161
      %p163 = scmp.eq.s32.totalorder %s25, 0
      %p164 = por %p162, %p163
      %p165 = scmp.le.s32.totalorder 1, %s19
      %p166 = scmp.lt.s32.totalorder %s19, 3
      %p167 = pnand %p165, %p166
      %p168 = pneg %p167
      // Predicated region
      $region9: #{tpu_custom_call.1} parent=5 // pred_check
        _
      $region10: #{tpu_custom_call.1} parent=5 // pred_check_branch
        %170 = sbr.rel (%p167) target = $region12
      $region11: #{tpu_custom_call.1} parent=5 // pred_region
        %s171 = ssub.s32 %s19, 1
        // Predicated region
        $region13: #{tpu_custom_call.1} parent=11 // pred_check
          %p172 = pneg %p108
        $region14: #{tpu_custom_call.1} parent=11 // pred_check_branch
          %174 = sbr.rel (%p172) target = $region16
        $region15: #{tpu_custom_call.1} parent=11 // pred_region
          %176 = vsyncadd [#allocation6], 0
          %s177 = sshll.u32 %s2, 4
          %s178 = int_to_ptr.hbm [resolvable:$true] %s177
          %s179 = sshll.u32 [#allocation7], 4
          %s180 = int_to_ptr.vmem [resolvable:$true] %s179
          %185 = dma.hbm_to_vmem [thread:$0]  %s178, 256, %s180, [#allocation6], 128, 128, 8
        $region16: #{tpu_custom_call.1} parent=11 // pred_fallthru
          _
        // Predicated region
        $region17: #{tpu_custom_call.1} parent=11 // pred_check
          %p186 = pneg %p129
        $region18: #{tpu_custom_call.1} parent=11 // pred_check_branch
          %188 = sbr.rel (%p186) target = $region20
        $region19: #{tpu_custom_call.1} parent=11 // pred_region
          _
        $region20: #{tpu_custom_call.1} parent=11 // pred_fallthru
          _
      $region12: #{tpu_custom_call.1} parent=5 // pred_fallthru
        _
      %p189 = scmp.lt.s32.totalorder %s19, 2
      // Predicated region
      $region21: #{tpu_custom_call.1} parent=5 // pred_check
        %p190 = pneg %p189
      $region22: #{tpu_custom_call.1} parent=5 // pred_check_branch
        %192 = sbr.rel (%p190) target = $region24
      $region23: #{tpu_custom_call.1} parent=5 // pred_region
        // Predicated region
        $region25: #{tpu_custom_call.1} parent=23 // pred_check
          %p193 = pneg %p53
        $region26: #{tpu_custom_call.1} parent=23 // pred_check_branch
          %195 = sbr.rel (%p193) target = $region28
        $region27: #{tpu_custom_call.1} parent=23 // pred_region
          %s196 = sand.u32 %s43, 1
          %s197 = scalar_lea.sflag [#allocation3], %s196
          %s198 = sand.u32 %s43, 1
          %s199 = smul.addr %s198, 16
          %s200 = scalar_lea.vmem [#allocation2], %s199
          %s201 = smul.u32 2, %s27
          %203 = vsyncadd %s197, 0
          %s204 = smul.addr %s26, 2
          %s205 = sadd.s32 %s201, %s204
          %s206 = smul.addr %s205, 8
          %s207 = scalar_lea.hbm %s0, %s206
          %s208 = sshll.u32 %s207, 4
          %s209 = int_to_ptr.hbm [resolvable:$true] %s208
          %s210 = sshll.u32 %s200, 4
          %s211 = int_to_ptr.vmem [resolvable:$true] %s210
          %216 = dma.hbm_to_vmem [thread:$0]  %s209, 256, %s211, %s197, 128, 128, 8
        $region28: #{tpu_custom_call.1} parent=23 // pred_fallthru
          _
        // Predicated region
        $region29: #{tpu_custom_call.1} parent=23 // pred_check
          %p217 = pneg %p81
        $region30: #{tpu_custom_call.1} parent=23 // pred_check_branch
          %219 = sbr.rel (%p217) target = $region32
        $region31: #{tpu_custom_call.1} parent=23 // pred_region
          %s220 = sand.u32 %s19, 1
          %s221 = scalar_lea.sflag [#allocation6], %s220
          %s222 = sand.u32 %s71, 1
          %s223 = smul.addr %s222, 2
          %s224 = scalar_lea.vmem [#allocation5], %s223
          %226 = vsyncadd %s221, 0
          %s227 = sadd.s32 %s27, %s26
          %s228 = smul.addr %s227, 2
          %s229 = scalar_lea.hbm %s1, %s228
          %s231 = sshll.u32 %s229, 4
          %s232 = int_to_ptr.hbm [resolvable:$true] %s231
          %s233 = sshll.u32 %s224, 4
          %s234 = int_to_ptr.vmem [resolvable:$true] %s233
          %236 = dma.hbm_to_vmem [thread:$0]  %s232, 32, %s234, %s221
        $region32: #{tpu_custom_call.1} parent=23 // pred_fallthru
          _
      $region24: #{tpu_custom_call.1} parent=5 // pred_fallthru
        _
      %p237 = scmp.le.s32.totalorder 1, %s19
      %p238 = scmp.lt.s32.totalorder %s19, 3
      %p239 = pnand %p237, %p238
      %p240 = pneg %p239
      // Predicated region
      $region33: #{tpu_custom_call.1} parent=5 // pred_check
        _
      $region34: #{tpu_custom_call.1} parent=5 // pred_check_branch
        %242 = sbr.rel (%p239) target = $region36
      $region35: #{tpu_custom_call.1} parent=5 // pred_region
        %s243 = ssub.s32 %s19, 1
        %s244 = sand.u32 %s46, 1
        %s245 = scalar_lea.sflag [#allocation3], %s244
        %s246 = sand.u32 %s46, 1
        %s247 = smul.addr %s246, 16
        %s248 = scalar_lea.vmem [#allocation2], %s247
        // Predicated region
        $region37: #{tpu_custom_call.1} parent=35 // pred_check
          %p249 = pneg %p59
        $region38: #{tpu_custom_call.1} parent=35 // pred_check_branch
          %251 = sbr.rel (%p249) target = $region40
        $region39: #{tpu_custom_call.1} parent=35 // pred_region
          %253 = dma.done %s245, 256
        $region40: #{tpu_custom_call.1} parent=35 // pred_fallthru
          _
        %s254 = sand.u32 %s24, 1
        %s255 = scalar_lea.sflag [#allocation6], %s254
        %s256 = sand.u32 %s74, 1
        %s257 = smul.addr %s256, 2
        %s258 = scalar_lea.vmem [#allocation5], %s257
        // Predicated region
        $region41: #{tpu_custom_call.1} parent=35 // pred_check
          %p259 = pneg %p87
        $region42: #{tpu_custom_call.1} parent=35 // pred_check_branch
          %261 = sbr.rel (%p259) target = $region44
        $region43: #{tpu_custom_call.1} parent=35 // pred_region
          %263 = dma.done %s255, 32
        $region44: #{tpu_custom_call.1} parent=35 // pred_fallthru
          _
        // Predicated region
        $region45: #{tpu_custom_call.1} parent=35 // pred_check
          %p264 = pneg %p108
        $region46: #{tpu_custom_call.1} parent=35 // pred_check_branch
          %266 = sbr.rel (%p264) target = $region48
        $region47: #{tpu_custom_call.1} parent=35 // pred_region
          %268 = dma.done [#allocation6], 256
        $region48: #{tpu_custom_call.1} parent=35 // pred_fallthru
          _
        %s269 = sand.u32 %s46, 1
        %s270 = scalar_lea.sflag [#allocation3], %s269
        %s271 = sand.u32 %s46, 1
        %s272 = smul.addr %s271, 16
        %s273 = scalar_lea.vmem [#allocation2], %s272
        %p274 = pneg %p59
        %p275 = pneg %p56
        %s276 = sand.u32 %s24, 1
        %s277 = scalar_lea.sflag [#allocation6], %s276
        %s278 = sand.u32 %s74, 1
        %s279 = smul.addr %s278, 2
        %s280 = scalar_lea.vmem [#allocation5], %s279
        %p281 = pneg %p87
        %p282 = pneg %p84
        %p283 = pneg %p108
        %p284 = pneg %p105
        %p285 = pneg %p129
        %p286 = pneg %p126
        %p287 = pneg %p157
        %p288 = pneg %p154
        %s289 = sand.u32 %s144, 1
        %s290 = scalar_lea.sflag [#allocation4], %s289
        %s291 = sand.u32 %s144, 1
        %s292 = smul.addr %s291, 16
        %s293 = scalar_lea.vmem [#allocation8], %s292
        %s294 = smul.u32 2, %s29
        %s295 = smul.u32 2, %s29
        %v296 = vld [vmem:[%s248] sm:$0xff]
        %v297 = vld [vmem:[%s248 + $0x8] sm:$0xff]
        %v298 = vld [vmem:[%s258] sm:$0x3]
        %v299 = vld [vmem:[#allocation7] sm:$0xff]
        %v300 = vld [vmem:[#allocation7 + $0x8] sm:$0x1]
        %v301 = vld [vmem:[%s3] sm:$0x1]
        %302 = vrot.lane.b32.xlu0 %v296, 8
        %v303 = vpop.permute.xlu0 %302
        %304 = vrot.lane.b32.xlu0 %v297, 8
        %v305 = vpop.permute.xlu0 %304
        %306 = vrot.lane.b32.xlu0 %v296, 120
        %v307 = vpop.permute.xlu0 %306
        %308 = vrot.lane.b32.xlu0 %v297, 120
        %v309 = vpop.permute.xlu0 %308
        %310 = vrot.lane.b32.xlu0 %v298, 8
        %v311 = vpop.permute.xlu0 %310
        %312 = vrot.lane.b32.xlu0 %v298, 120
        %v313 = vpop.permute.xlu0 %312
        %v314 = vperm.slane %v299, 0
        %v315 = vmul.f32 %v303, %v314
        %v316 = vmul.f32 %v305, %v314
        %v317 = vperm.slane %v299, 1
        %v318 = vmul.f32 %v296, %v317
        %v319 = vmul.f32 %v297, %v317
        %v320 = vadd.f32 %v315, %v318
        %v321 = vadd.f32 %v316, %v319
        %v322 = vperm.slane %v299, 2
        %v323 = vmul.f32 %v307, %v322
        %v324 = vmul.f32 %v309, %v322
        %v325 = vadd.f32 %v320, %v323
        %v326 = vadd.f32 %v321, %v324
        %v327 = vperm.slane %v299, 3
        %v328 = vmul.f32 %v303, %v327
        %v329 = vmul.f32 %v305, %v327
        %v330 = vperm.slane %v299, 4
        %v331 = vmul.f32 %v296, %v330
        %v332 = vmul.f32 %v297, %v330
        %v333 = vadd.f32 %v328, %v331
        %v334 = vadd.f32 %v329, %v332
        %v335 = vperm.slane %v299, 5
        %v336 = vmul.f32 %v307, %v335
        %v337 = vmul.f32 %v309, %v335
        %v338 = vadd.f32 %v333, %v336
        %v339 = vadd.f32 %v334, %v337
        %v341 = vperm.slane %v301, 0
        %v343 = vadd.f32 %v338, %v341
        %v344 = vadd.f32 %v339, %v341
        %v345 = vperm.slane %v299, 6
        %v346 = vmul.f32 %v303, %v345
        %v347 = vmul.f32 %v305, %v345
        %v348 = vperm.slane %v299, 7
        %v349 = vmul.f32 %v296, %v348
        %v350 = vmul.f32 %v297, %v348
        %v351 = vadd.f32 %v346, %v349
        %v352 = vadd.f32 %v347, %v350
        %v353 = vperm.slane %v300, 0
        %v354 = vmul.f32 %v307, %v353
        %v355 = vmul.f32 %v309, %v353
        %v356 = vadd.f32 %v351, %v354
        %v357 = vadd.f32 %v352, %v355
        %v358 = vmul.f32 %v311, %v299
        %v360 = vrot.slane %v299, 1
        %v362 = vmul.f32 %v298, %v360
        %v363 = vadd.f32 %v358, %v362
        %v364 = vrot.slane %v299, 2
        %v366 = vmul.f32 %v313, %v364
        %v367 = vadd.f32 %v363, %v366
        %v368 = vrot.slane %v299, 5
        %v370 = vmul.f32 %v311, %v368
        %v371 = vrot.slane %v299, 6
        %v373 = vmul.f32 %v298, %v371
        %v374 = vadd.f32 %v370, %v373
        %v376 = vrot.slane %v300, 7
        %v378 = vmul.f32 %v313, %v376
        %v379 = vadd.f32 %v374, %v378
        %v380 = vlaneseq
        %v381 = vshrl.u32 %v380, 7
        %v382 = vadd.s32 %v381, 8
        %v383 = vrot.slane %v325, 7
        %v384 = vrot.slane %v326, 7
        %vm385 = vcmp.lt.s32.totalorder %v381, 1
        %v386 = vsel %vm385, %v383, %v384
        %v387 = vsel %vm385, %v384, %v383
        %vm388 = vcmp.eq.s32.totalorder %v381, 0
        %vm389 = vcmp.eq.s32.totalorder %v382, 0
        %v390 = vsel %vm388, 1, 0
        %v391 = vsel %vm389, 1, 0
        %vm392 = vcmp.eq.s32.totalorder %v390, 1
        %vm393 = vcmp.eq.s32.totalorder %v391, 1
        %v394 = vperm.slane %v367, 0
        %v395 = vsel %vm392, %v394, %v387
        %v396 = vsel %vm393, %v394, %v386
        %v397 = vrot.slane %v356, 1
        %v398 = vrot.slane %v357, 1
        %vm399 = vcmp.lt.s32.totalorder %v381, 7
        %v400 = vsel %vm399, %v397, %v398
        %v401 = vsel %vm399, %v398, %v397
        %vm402 = vcmp.eq.s32.totalorder %v381, 15
        %vm403 = vcmp.eq.s32.totalorder %v382, 15
        %v404 = vsel %vm402, 1, 0
        %v405 = vsel %vm403, 1, 0
        %vm406 = vcmp.eq.s32.totalorder %v404, 1
        %vm407 = vcmp.eq.s32.totalorder %v405, 1
        %v408 = vperm.slane %v379, 1
        %v409 = vsel %vm406, %v408, %v400
        %v410 = vsel %vm407, %v408, %v401
        %v411 = vadd.f32 %v343, %v395
        %v412 = vadd.f32 %v344, %v396
        %v413 = vadd.f32 %v411, %v409
        %v414 = vadd.f32 %v412, %v410
        %415 = vst [vmem:[%s293] sm:$0xff] %v413
        %416 = vst [vmem:[%s293 + $0x8] sm:$0xff] %v414
        %s417 = sand.u32 %s144, 1
        %s418 = scalar_lea.sflag [#allocation4], %s417
        %s419 = sand.u32 %s144, 1
        %s420 = smul.addr %s419, 16
        %s421 = scalar_lea.vmem [#allocation8], %s420
        // Predicated region
        $region49: #{tpu_custom_call.1} parent=35 // pred_check
          %p422 = pneg %p154
        $region50: #{tpu_custom_call.1} parent=35 // pred_check_branch
          %424 = sbr.rel (%p422) target = $region52
        $region51: #{tpu_custom_call.1} parent=35 // pred_region
          %s425 = smul.u32 2, %s29
          %427 = vsyncadd %s418, 0
          %s428 = smul.addr %s28, 2
          %s429 = sadd.s32 %s425, %s428
          %s430 = smul.addr %s429, 8
          %s431 = scalar_lea.hbm %s4, %s430
          %s432 = sshll.u32 %s421, 4
          %s433 = int_to_ptr.vmem [resolvable:$true] %s432
          %s434 = sshll.u32 %s431, 4
          %s435 = int_to_ptr.hbm [resolvable:$true] %s434
          %440 = dma.vmem_to_hbm [thread:$0]  %s433, 256, %s435, %s418, 128, 128, 8
        $region52: #{tpu_custom_call.1} parent=35 // pred_fallthru
          _
      $region36: #{tpu_custom_call.1} parent=5 // pred_fallthru
        _
      %p441 = scmp.le.s32.totalorder 2, %s19
      // Predicated region
      $region53: #{tpu_custom_call.1} parent=5 // pred_check
        %p442 = pneg %p441
      $region54: #{tpu_custom_call.1} parent=5 // pred_check_branch
        %444 = sbr.rel (%p442) target = $region56
      $region55: #{tpu_custom_call.1} parent=5 // pred_region
        %s445 = ssub.s32 %s19, 2
        // Predicated region
        $region57: #{tpu_custom_call.1} parent=55 // pred_check
          %p446 = pneg %p160
        $region58: #{tpu_custom_call.1} parent=55 // pred_check_branch
          %448 = sbr.rel (%p446) target = $region60
        $region59: #{tpu_custom_call.1} parent=55 // pred_region
          %s449 = sand.u32 %s145, 1
          %s450 = scalar_lea.sflag [#allocation4], %s449
          %s451 = sand.u32 %s145, 1
          %s452 = smul.addr %s451, 16
          %s453 = scalar_lea.vmem [#allocation8], %s452
          %455 = dma.done %s450, 256
        $region60: #{tpu_custom_call.1} parent=55 // pred_fallthru
          _
      $region56: #{tpu_custom_call.1} parent=5 // pred_fallthru
        _
    $region6: #{tpu_custom_call.1} parent=1 // loop_footer
      %s23 = sadd.s32 1, %s19
    $region7: #{tpu_custom_call.1} parent=1 // loop_footer_branch
      %18 = sbr.rel target = $region3
    $region8: #{tpu_custom_call.1} parent=1 // loop_exit
      _
    %456 = vsyncpa [#allocation3], 1
    %s457 = scalar_lea.sflag [#allocation3], 1
    %458 = vsyncpa %s457, 1
    %459 = vsyncpa [#allocation6], 1
    %s460 = scalar_lea.sflag [#allocation6], 1
    %461 = vsyncpa %s460, 1
    %462 = vsyncpa [#allocation4], 1
    %s463 = scalar_lea.sflag [#allocation4], 1
    %464 = vsyncpa %s463, 1

</llo_original>
